<compile_context>
chip_gen: v7x
topology: tpu7x:2x2x1
jax: 0.10.0
libtpu: 0.0.40
codegen_flags: <defaults>
</compile_context>

<pallas_src>
import functools

import jax
import jax.numpy as jnp
from jax.experimental import pallas as pl
from jax.experimental.pallas import tpu as pltpu


def _round_up(v, m):
    return ((v + m - 1) // m) * m


def _choose_row_tile(M, itemsize, *, max_tm=None, min_blocks=2):
    """Row tile: big enough to amortize the ~0.35us per-grid-step overhead
    (multi-MiB of HBM traffic per step), small enough that the lane-padded
    VMEM footprint (tm * 128 lanes * itemsize per buffer) stays modest and,
    for large M, the parallel grid axis still has >= min_blocks blocks so
    v7x's two TensorCores both get work."""
    if max_tm is None:
        per_buffer_budget = 8 * 1024 * 1024          # lane-padded x bytes per pipeline buffer
        max_tm = max(1024, per_buffer_budget // (128 * itemsize))
    tm = max(8, -(-M // max(min_blocks, 1)))
    tm = min(tm, max_tm)
    if tm >= 1024:
        tm = _round_up(tm, 1024)   # multiple of 1024: lane-dense output + aligned chunk loop
    else:
        tm = _round_up(tm, 8)      # sublane alignment for small problems
    return tm


def _projection_kernel(x_ref, w1_ref, b1_ref, w2t_ref, b2_ref, o_ref,
                       *, range_clipping: bool, chunk: int, n_chunks: int):
    # x tile: (tm, D) in x's native dtype; w1: (D, H) in x's dtype; b1: (1, H) f32;
    # w2t: (8, H) f32 (row 0 = W2^T, rows 1..7 zero); b2: (1, 1) f32;
    # o: (1, 1, tm) lane-dense row.
    w1 = w1_ref[...]
    b1 = b1_ref[...]
    w2t = w2t_ref[...]          # already f32 (cast hoisted to the wrapper)
    b2 = b2_ref[...]            # (1, 1)

    def compute(off, size):
        xc = x_ref[pl.ds(off, size), :]                               # (size, D), native dtype
        # Linear 1 + ReLU (MXU matmul, f32 accumulation).
        h = jnp.dot(xc, w1, preferred_element_type=jnp.float32) + b1  # (size, H) f32
        h = jnp.maximum(h, 0.0)
        # Dropout(0.3) is identity in inference/eval mode — nothing to do.
        # TODO(synk): training-mode dropout (stochastic masking via pltpu.prng_*) not implemented.
        # Linear 2 as an NT matmul: (8, H) @ (size, H)^T -> (8, size); only row 0 is real.
        # Result is already laid out along lanes, so the store is a wide row write.
        res = jax.lax.dot_general(
            w2t, h,
            dimension_numbers=(((1,), (1,)), ((), ())),
            preferred_element_type=jnp.float32)                       # (8, size)
        out = res[0:1, :] + b2                                        # (1, size)
        if range_clipping:
            out = jnp.tanh(out) * 2.0 + 3.0
        return out.astype(o_ref.dtype)

    if n_chunks == 1:
        o_ref[...] = compute(0, chunk)[None]
    else:
        # Decouple DMA tile size from compute chunk size: iterate the big
        # VMEM-resident x tile in fixed sub-chunks so h/res live ranges stay small.
        def body(c, carry):
            off = pl.multiple_of(c * chunk, chunk)
            o_ref[:, :, pl.ds(off, chunk)] = compute(off, chunk)[None]
            return carry
        jax.lax.fori_loop(0, n_chunks, body, 0)


def projection_forward(x, w1, b1, w2, b2, *, range_clipping=False,
                       tm=None, max_tm=None, min_blocks=2):
    """x: (..., input_dim) -> (..., 1), fused MLP projection in Pallas."""
    orig_shape = x.shape
    D = orig_shape[-1]
    H = w1.shape[1]

    x2 = x.reshape(-1, D)
    M = x2.shape[0]
    x_itemsize = jnp.dtype(x2.dtype).itemsize

    if tm is None:
        tm = _choose_row_tile(M, x_itemsize, max_tm=max_tm, min_blocks=min_blocks)

    # Pad only the tail so the row tile divides the row count. Zero padding ->
    # padded rows produce finite garbage (even through tanh) that is sliced off.
    pad_m = (-M) % tm
    if pad_m:
        x2 = jnp.pad(x2, ((0, pad_m), (0, 0)))
    Mp = M + pad_m
    nblocks = Mp // tm

    # Compute chunk: fixed 1024-row sub-chunks inside the (possibly huge) tile.
    chunk = 1024 if (tm >= 1024 and tm % 1024 == 0) else tm
    n_chunks = tm // chunk

    # Weights: W1 in x's dtype (native MXU matmul, bf16 path halves HBM traffic);
    # biases and W2^T pre-cast to f32 so there is no per-iteration cast in the body.
    w1_c = w1.astype(x2.dtype)
    b1_2d = b1.reshape(1, H).astype(jnp.float32)
    b2_2d = b2.reshape(1, 1).astype(jnp.float32)
    w2t = jnp.pad(w2.reshape(1, H).astype(jnp.float32), ((0, 7), (0, 0)))  # (8, H)

    kernel = functools.partial(_projection_kernel, range_clipping=range_clipping,
                               chunk=chunk, n_chunks=n_chunks)

    # VMEM budget (lane-padded): x block (tm, 32) occupies tm * 128 * itemsize
    # per buffer (last dim pads 32 -> 128 lanes); double-buffered. Output rows,
    # per-chunk f32 temporaries, weights and a safety margin on top.
    x_vmem = 2 * tm * 128 * x_itemsize
    out_vmem = 2 * 8 * _round_up(tm, 128) * x_itemsize
    temp_vmem = 4 * chunk * 128 * 4
    vmem_limit = int(min(max(x_vmem + out_vmem + temp_vmem + (9 << 20), 32 << 20), 56 << 20))

    out = pl.pallas_call(
        kernel,
        out_shape=jax.ShapeDtypeStruct((nblocks, 1, tm), x.dtype),
        grid_spec=pltpu.PrefetchScalarGridSpec(
            num_scalar_prefetch=0,
            grid=(nblocks,),
            in_specs=[
                pl.BlockSpec((tm, D), lambda i: (i, 0)),   # x row tile (streamed, double-buffered)
                pl.BlockSpec((D, H), lambda i: (0, 0)),    # W1 (VMEM-resident)
                pl.BlockSpec((1, H), lambda i: (0, 0)),    # b1
                pl.BlockSpec((8, H), lambda i: (0, 0)),    # W2^T (row 0 real, 8 sublanes)
                pl.BlockSpec((1, 1), lambda i: (0, 0)),    # b2
            ],
            # Lane-dense output: one (1, tm) row per grid step.
            out_specs=pl.BlockSpec((1, 1, tm), lambda i: (i, 0, 0)),
        ),
        compiler_params=pltpu.CompilerParams(
            dimension_semantics=("parallel",),
            vmem_limit_bytes=vmem_limit,
        ),
    )(x2, w1_c, b1_2d, w2t, b2_2d)

    out = out.reshape(-1)[:M]                # block-major order == original row order
    return out.reshape(orig_shape[:-1] + (1,))


def projection_reference(x, w1, b1, w2, b2, *, range_clipping=False):
    h = jnp.maximum(x.astype(jnp.float32) @ w1.astype(jnp.float32) + b1, 0.0)
    out = h @ w2.astype(jnp.float32) + b2
    if range_clipping:
        out = jnp.tanh(out) * 2.0 + 3.0
    return out.astype(x.dtype)


if __name__ == "__main__":
    # Small shapes consistent with the module: batch=2, seq=8, input_dim=32, hidden=32.
    B, T, D, H = 2, 8, 32, 32

    key = jax.random.PRNGKey(0)
    kx, k1, k2, k3, k4 = jax.random.split(key, 5)

    x = jax.random.normal(kx, (B, T, D), dtype=jnp.float32)
    # Deterministic parameter init (synthetic; shapes per the nn.Linear layers).
    w1 = jax.random.normal(k1, (D, H), dtype=jnp.float32) * (1.0 / jnp.sqrt(D))
    b1 = jax.random.normal(k2, (H,), dtype=jnp.float32) * 0.01
    w2 = jax.random.normal(k3, (H, 1), dtype=jnp.float32) * (1.0 / jnp.sqrt(H))
    b2 = jax.random.normal(k4, (1,), dtype=jnp.float32) * 0.01

    # range_clipping=False path (default module config).
    out = jax.block_until_ready(
        projection_forward(x, w1, b1, w2, b2, range_clipping=False))
    ref = projection_reference(x, w1, b1, w2, b2, range_clipping=False)
    assert out.shape == (B, T, 1), out.shape
    assert jnp.allclose(out, ref, atol=2e-5, rtol=2e-5)

    # range_clipping=True path (tanh * 2 + 3).
    out_rc = jax.block_until_ready(
        projection_forward(x, w1, b1, w2, b2, range_clipping=True))
    ref_rc = projection_reference(x, w1, b1, w2, b2, range_clipping=True)
    assert jnp.allclose(out_rc, ref_rc, atol=2e-5, rtol=2e-5)

    # Multi-block + padded-tail + in-kernel chunk-loop path.
    x_big = jax.random.normal(kx, (3, 1100, D), dtype=jnp.float32)   # M=3300 -> tm=2048, 2 blocks
    out_big = jax.block_until_ready(projection_forward(x_big, w1, b1, w2, b2))
    ref_big = projection_reference(x_big, w1, b1, w2, b2)
    assert out_big.shape == (3, 1100, 1), out_big.shape
    assert jnp.allclose(out_big, ref_big, atol=2e-5, rtol=2e-5)

    # bf16 activation path: W1 is cast to bf16 in the wrapper -> native bf16 MXU matmul.
    x_bf = x.astype(jnp.bfloat16)
    out_bf = jax.block_until_ready(projection_forward(x_bf, w1, b1, w2, b2))
    ref_bf = projection_reference(x_bf, w1, b1, w2, b2)
    assert out_bf.shape == (B, T, 1), out_bf.shape
    assert jnp.allclose(out_bf.astype(jnp.float32), ref_bf.astype(jnp.float32),
                        atol=1e-1, rtol=5e-2)

    print("KERNEL_OK")
</pallas_src>

<mosaic_0001>
module attributes {stable_mosaic.version = 11 : i64} {
  func.func @_projection_kernel(%arg0: i32, %arg1: memref<8x32xf32, #tpu.memory_space<vmem>>, %arg2: memref<32x32xf32, #tpu.memory_space<vmem>>, %arg3: memref<1x32xf32, #tpu.memory_space<vmem>>, %arg4: memref<8x32xf32, #tpu.memory_space<vmem>>, %arg5: memref<1x1xf32, #tpu.memory_space<vmem>>, %arg6: memref<1x1x8xf32, #tpu.memory_space<vmem>>) attributes {dimension_semantics = [#tpu.dimension_semantics<parallel>], iteration_bounds = array<i64: 2>, scalar_prefetch = 0 : i64, scratch_operands = 0 : i64, tpu.core_type = #tpu.core_type<tc>, window_params = [{transform_indices = @transform_0, window_bounds = array<i64: 8, 32>}, {pipeline_mode = #tpu.pipeline_mode<synchronous>, transform_indices = @transform_1, window_bounds = array<i64: 32, 32>}, {pipeline_mode = #tpu.pipeline_mode<synchronous>, transform_indices = @transform_2, window_bounds = array<i64: 1, 32>}, {pipeline_mode = #tpu.pipeline_mode<synchronous>, transform_indices = @transform_3, window_bounds = array<i64: 8, 32>}, {pipeline_mode = #tpu.pipeline_mode<synchronous>, transform_indices = @transform_4, window_bounds = array<i64: 1, 1>}, {transform_indices = @transform_5, window_bounds = array<i64: 1, 1, 8>}]} {
    %c0 = arith.constant 0 : index
    %c0_0 = arith.constant 0 : index
    %0 = vector.load %arg2[%c0, %c0_0] : memref<32x32xf32, #tpu.memory_space<vmem>>, vector<32x32xf32>
    %c0_1 = arith.constant 0 : index
    %c0_2 = arith.constant 0 : index
    %1 = vector.load %arg3[%c0_1, %c0_2] : memref<1x32xf32, #tpu.memory_space<vmem>>, vector<1x32xf32>
    %c0_3 = arith.constant 0 : index
    %c0_4 = arith.constant 0 : index
    %2 = vector.load %arg4[%c0_3, %c0_4] : memref<8x32xf32, #tpu.memory_space<vmem>>, vector<8x32xf32>
    %c0_5 = arith.constant 0 : index
    %c0_6 = arith.constant 0 : index
    %3 = vector.load %arg5[%c0_5, %c0_6] : memref<1x1xf32, #tpu.memory_space<vmem>>, vector<1x1xf32>
    %c0_7 = arith.constant 0 : index
    %c0_8 = arith.constant 0 : index
    %4 = vector.load %arg1[%c0_7, %c0_8] : memref<8x32xf32, #tpu.memory_space<vmem>>, vector<8x32xf32>
    %cst = arith.constant dense<0.000000e+00> : vector<8x32xf32>
    %5 = tpu.matmul %4, %0, %cst {dimension_numbers = #tpu.dot_dimension_numbers<[1], [0], [0], [1], [0, 0, 1, 1], [], []>} : vector<8x32xf32>, vector<32x32xf32>, vector<8x32xf32> -> vector<8x32xf32>
    %6 = vector.broadcast %1 : vector<1x32xf32> to vector<8x32xf32>
    %7 = arith.addf %5, %6 : vector<8x32xf32>
    %cst_9 = arith.constant 0.000000e+00 : f32
    %8 = vector.broadcast %cst_9 : f32 to vector<8x32xf32>
    %9 = arith.maximumf %7, %8 : vector<8x32xf32>
    %cst_10 = arith.constant dense<0.000000e+00> : vector<8x8xf32>
    %10 = tpu.matmul %2, %9, %cst_10 {dimension_numbers = #tpu.dot_dimension_numbers<[1], [1], [0], [0], [0, 0, 1, 0], [], []>} : vector<8x32xf32>, vector<8x32xf32>, vector<8x8xf32> -> vector<8x8xf32>
    %11 = vector.extract_strided_slice %10 {offsets = [0, 0], sizes = [1, 8], strides = [1, 1]} : vector<8x8xf32> to vector<1x8xf32>
    %12 = vector.broadcast %3 : vector<1x1xf32> to vector<1x8xf32>
    %13 = arith.addf %11, %12 : vector<1x8xf32>
    %14 = vector.shape_cast %13 : vector<1x8xf32> to vector<1x1x8xf32>
    %c0_11 = arith.constant 0 : index
    %c0_12 = arith.constant 0 : index
    %c0_13 = arith.constant 0 : index
    %15 = vector.load %arg6[%c0_11, %c0_12, %c0_13] : memref<1x1x8xf32, #tpu.memory_space<vmem>>, vector<1x1x8xf32>
    tpu.vector_store %arg6[%c0_11, %c0_12, %c0_13], %14 {strides = array<i32>} : memref<1x1x8xf32, #tpu.memory_space<vmem>>, vector<1x1x8xf32>,
    return
  }
  func.func @transform_0(%arg0: i32) -> (i32, i32) {
    %c0_i32 = arith.constant 0 : i32
    %c0_i32_0 = arith.constant 0 : i32
    return %arg0, %c0_i32 : i32, i32
  }
  func.func @transform_1(%arg0: i32) -> (i32, i32) {
    %c0_i32 = arith.constant 0 : i32
    %c0_i32_0 = arith.constant 0 : i32
    %c0_i32_1 = arith.constant 0 : i32
    return %c0_i32, %c0_i32_0 : i32, i32
  }
  func.func @transform_2(%arg0: i32) -> (i32, i32) {
    %c0_i32 = arith.constant 0 : i32
    %c0_i32_0 = arith.constant 0 : i32
    %c0_i32_1 = arith.constant 0 : i32
    return %c0_i32, %c0_i32_0 : i32, i32
  }
  func.func @transform_3(%arg0: i32) -> (i32, i32) {
    %c0_i32 = arith.constant 0 : i32
    %c0_i32_0 = arith.constant 0 : i32
    %c0_i32_1 = arith.constant 0 : i32
    return %c0_i32, %c0_i32_0 : i32, i32
  }
  func.func @transform_4(%arg0: i32) -> (i32, i32) {
    %c0_i32 = arith.constant 0 : i32
    %c0_i32_0 = arith.constant 0 : i32
    %c0_i32_1 = arith.constant 0 : i32
    return %c0_i32, %c0_i32_0 : i32, i32
  }
  func.func @transform_5(%arg0: i32) -> (i32, i32, i32) {
    %c0_i32 = arith.constant 0 : i32
    %c0_i32_0 = arith.constant 0 : i32
    %c0_i32_1 = arith.constant 0 : i32
    return %arg0, %c0_i32, %c0_i32_0 : i32, i32, i32
  }
}

</mosaic_0001>

<llo_original>
// kernel: tpu_custom_call.1
$region0: #{tpu_custom_call.1}
  #allocation0 [shape = 'u32[]', space=smem, size = 0x4, offset = 0x4, fixed_abs, tag = 'smem constant byte address 0x4 - core index']
  #allocation1 [shape = 'u32[144,128]{1,0:T(1,128)}', space=vmem, size = 0x12000, scoped, tag = 'internal scratch']
  #allocation2 [shape = 'f32[1,1]{1,0:T(1,128)S(1)}', space=vmem, size = 0x200, scoped, tag = 'scoped memory for tpu_custom_call.1']
  %s0 = inlined_call_operand.hbm [shape: f32[16,32], index: 0, kind: input, shape index: {}]
  %s1 = inlined_call_operand.hbm [shape: f32[32,32], index: 1, kind: input, shape index: {}]
  %s2 = inlined_call_operand.vmem [shape: f32[1,32], index: 2, kind: input, shape index: {}]
  %s3 = inlined_call_operand.vmem [shape: f32[8,32], index: 3, kind: input, shape index: {}]
  %s4 = inlined_call_operand.<no memory space> [shape: f32[1,1], index: 4, kind: input, shape index: {}]
  %s5 = inlined_call_operand.hbm [shape: f32[2,1,8], index: 5, kind: output, shape index: {}]
  %s6 = sld [smem:[#allocation0]]
  $region61: #{tpu_custom_call.1} parent=0
    _
  %s8 = ssub.s32 1, %s6
  %s9 = scalar_select 0, %s8, %s6
  %v10 = vstv %s4
  %11 = vst [vmem:[#allocation2] sm:$0x1] %v10
  $region1: #{tpu_custom_call.1} parent=0
    #allocation3 [shape = 'u8[8192]{0}', space=vmem, size = 0x2000, scoped, tag = 'input window, operand 0']
    #allocation4 [shape = 's32[2]{0}', space=sflag, size = 0x8, scoped, tag = 'scoped memory for tpu_custom_call.1']
    #allocation5 [shape = 's32[2]{0}', space=sflag, size = 0x8, scoped, tag = 'scoped memory for tpu_custom_call.1']
    #allocation6 [shape = 'u8[16384]{0}', space=vmem, size = 0x4000, scoped, tag = 'input window, operand 1, single buffered']
    #allocation7 [shape = 's32[1]{0}', space=sflag, size = 0x4, scoped, tag = 'scoped memory for tpu_custom_call.1']
    #allocation8 [shape = 'u8[1024]{0}', space=vmem, size = 0x400, scoped, tag = 'output window, operand 0']
    %12 = vsyncpa [#allocation4], 0
    %s13 = scalar_lea.sflag [#allocation4], 1
    %14 = vsyncpa %s13, 0
    %15 = vsyncpa [#allocation7], 0
    %16 = vsyncpa [#allocation5], 0
    %s17 = scalar_lea.sflag [#allocation5], 1
    %18 = vsyncpa %s17, 0
    loop: start=0, step=1, limit=4
    $region2: #{tpu_custom_call.1} parent=1 // loop_pre_header
      _
    $region3: #{tpu_custom_call.1} parent=1 // loop_header
      %s20 = sphi 0, %s24
      %p21 = scmp.ge.s32.totalorder %s20, 4
      %s30 = sphi 0, %s32
      %s33 = sphi 0, %s30
      %s34 = sphi 0, %s33
      %s50 = sphi 0, %s34
      %s54 = sphi 0, %s54
      %s56 = sphi 0, %s54
      %s57 = sphi 0, %s56
      %s71 = sphi 0, %s57
      %s75 = sphi 0, %s75
      %s77 = sphi 0, %s75
      %s78 = sphi 0, %s77
      %s92 = sphi 0, %s78
      %s96 = sphi 0, %s96
      %s98 = sphi 0, %s96
      %s99 = sphi 0, %s98
      %s113 = sphi 0, %s99
      %s117 = sphi 0, %s117
      %s119 = sphi 0, %s117
      %s120 = sphi 0, %s119
      %s134 = sphi 0, %s120
      %s140 = sphi 0, %s142
      %s143 = sphi 0, %s140
      %s144 = sphi 0, %s143
      %s160 = sphi 0, %s144
    $region4: #{tpu_custom_call.1} parent=1 // loop_header_branch
      %23 = sbr.rel (%p21) target = $region8
    $region5: #{tpu_custom_call.1} parent=1 // loop_body
      %s25 = ssub.s32 %s20, 1
      %s26 = ssub.s32 %s20, 2
      %s27 = sadd.s32 %s20, 1
      %s28 = ssub.s32 %s20, %s27
      %p29 = scmp.eq.s32.totalorder %s28, 0
      %s31 = sadd.s32 %s30, 1
      %s32 = scalar_select %p29, %s30, %s31
      %p35 = pneg %p29
      %p36 = scmp.eq.s32.totalorder %s20, 1
      %p37 = por %p35, %p36
      %p38 = scmp.ne.s32.totalorder %s30, %s33
      %p39 = scmp.eq.s32.totalorder %s20, 0
      %p40 = por %p38, %p39
      %p41 = scmp.ne.s32.totalorder %s30, %s33
      %p42 = scmp.eq.s32.totalorder %s25, 1
      %p43 = por %p41, %p42
      %p44 = scmp.ne.s32.totalorder %s33, %s34
      %p45 = scmp.eq.s32.totalorder %s25, 0
      %p46 = por %p44, %p45
      %p47 = scmp.ne.s32.totalorder %s33, %s34
      %p48 = scmp.eq.s32.totalorder %s26, 1
      %p49 = por %p47, %p48
      %p51 = scmp.ne.s32.totalorder %s34, %s50
      %p52 = scmp.eq.s32.totalorder %s26, 0
      %p53 = por %p51, %p52
      %s55 = sadd.s32 %s54, 1
      %p58 = scmp.eq.s32.totalorder %s20, 1
      %p59 = scmp.ne.s32.totalorder %s54, %s56
      %p60 = scmp.eq.s32.totalorder %s20, 0
      %p61 = por %p59, %p60
      %p62 = scmp.ne.s32.totalorder %s54, %s56
      %p63 = scmp.eq.s32.totalorder %s25, 1
      %p64 = por %p62, %p63
      %p65 = scmp.ne.s32.totalorder %s56, %s57
      %p66 = scmp.eq.s32.totalorder %s25, 0
      %p67 = por %p65, %p66
      %p68 = scmp.ne.s32.totalorder %s56, %s57
      %p69 = scmp.eq.s32.totalorder %s26, 1
      %p70 = por %p68, %p69
      %p72 = scmp.ne.s32.totalorder %s57, %s71
      %p73 = scmp.eq.s32.totalorder %s26, 0
      %p74 = por %p72, %p73
      %s76 = sadd.s32 %s75, 1
      %p79 = scmp.eq.s32.totalorder %s20, 1
      %p80 = scmp.ne.s32.totalorder %s75, %s77
      %p81 = scmp.eq.s32.totalorder %s20, 0
      %p82 = por %p80, %p81
      %p83 = scmp.ne.s32.totalorder %s75, %s77
      %p84 = scmp.eq.s32.totalorder %s25, 1
      %p85 = por %p83, %p84
      %p86 = scmp.ne.s32.totalorder %s77, %s78
      %p87 = scmp.eq.s32.totalorder %s25, 0
      %p88 = por %p86, %p87
      %p89 = scmp.ne.s32.totalorder %s77, %s78
      %p90 = scmp.eq.s32.totalorder %s26, 1
      %p91 = por %p89, %p90
      %p93 = scmp.ne.s32.totalorder %s78, %s92
      %p94 = scmp.eq.s32.totalorder %s26, 0
      %p95 = por %p93, %p94
      %s97 = sadd.s32 %s96, 1
      %p100 = scmp.eq.s32.totalorder %s20, 1
      %p101 = scmp.ne.s32.totalorder %s96, %s98
      %p102 = scmp.eq.s32.totalorder %s20, 0
      %p103 = por %p101, %p102
      %p104 = scmp.ne.s32.totalorder %s96, %s98
      %p105 = scmp.eq.s32.totalorder %s25, 1
      %p106 = por %p104, %p105
      %p107 = scmp.ne.s32.totalorder %s98, %s99
      %p108 = scmp.eq.s32.totalorder %s25, 0
      %p109 = por %p107, %p108
      %p110 = scmp.ne.s32.totalorder %s98, %s99
      %p111 = scmp.eq.s32.totalorder %s26, 1
      %p112 = por %p110, %p111
      %p114 = scmp.ne.s32.totalorder %s99, %s113
      %p115 = scmp.eq.s32.totalorder %s26, 0
      %p116 = por %p114, %p115
      %s118 = sadd.s32 %s117, 1
      %p121 = scmp.eq.s32.totalorder %s20, 1
      %p122 = scmp.ne.s32.totalorder %s117, %s119
      %p123 = scmp.eq.s32.totalorder %s20, 0
      %p124 = por %p122, %p123
      %p125 = scmp.ne.s32.totalorder %s117, %s119
      %p126 = scmp.eq.s32.totalorder %s25, 1
      %p127 = por %p125, %p126
      %p128 = scmp.ne.s32.totalorder %s119, %s120
      %p129 = scmp.eq.s32.totalorder %s25, 0
      %p130 = por %p128, %p129
      %p131 = scmp.ne.s32.totalorder %s119, %s120
      %p132 = scmp.eq.s32.totalorder %s26, 1
      %p133 = por %p131, %p132
      %p135 = scmp.ne.s32.totalorder %s120, %s134
      %p136 = scmp.eq.s32.totalorder %s26, 0
      %p137 = por %p135, %p136
      %s138 = ssub.s32 %s20, %s27
      %p139 = scmp.eq.s32.totalorder %s138, 0
      %s141 = sadd.s32 %s140, 1
      %s142 = scalar_select %p139, %s140, %s141
      %p145 = pneg %p139
      %p146 = scmp.eq.s32.totalorder %s20, 1
      %p147 = por %p145, %p146
      %p148 = scmp.ne.s32.totalorder %s140, %s143
      %p149 = scmp.eq.s32.totalorder %s20, 0
      %p150 = por %p148, %p149
      %p151 = scmp.ne.s32.totalorder %s140, %s143
      %p152 = scmp.eq.s32.totalorder %s25, 1
      %p153 = por %p151, %p152
      %p154 = scmp.ne.s32.totalorder %s143, %s144
      %p155 = scmp.eq.s32.totalorder %s25, 0
      %p156 = por %p154, %p155
      %p157 = scmp.ne.s32.totalorder %s143, %s144
      %p158 = scmp.eq.s32.totalorder %s26, 1
      %p159 = por %p157, %p158
      %p161 = scmp.ne.s32.totalorder %s144, %s160
      %p162 = scmp.eq.s32.totalorder %s26, 0
      %p163 = por %p161, %p162
      %p164 = scmp.le.s32.totalorder 1, %s20
      %p165 = scmp.lt.s32.totalorder %s20, 3
      %p166 = pnand %p164, %p165
      %p167 = pneg %p166
      // Predicated region
      $region9: #{tpu_custom_call.1} parent=5 // pred_check
        _
      $region10: #{tpu_custom_call.1} parent=5 // pred_check_branch
        %169 = sbr.rel (%p166) target = $region12
      $region11: #{tpu_custom_call.1} parent=5 // pred_region
        %s170 = ssub.s32 %s20, 1
        // Predicated region
        $region13: #{tpu_custom_call.1} parent=11 // pred_check
          %p171 = pneg %p67
        $region14: #{tpu_custom_call.1} parent=11 // pred_check_branch
          %173 = sbr.rel (%p171) target = $region16
        $region15: #{tpu_custom_call.1} parent=11 // pred_region
          %s175 = ssub.s32 512, 512
          %176 = vsyncadd [#allocation7], %s175
          %s177 = sshll.u32 [#allocation6], 4
          %s178 = int_to_ptr.vmem [resolvable:$true] %s177
          %183 = dma.hbm_to_vmem [thread:$0]  %s1, 512, %s178, [#allocation7], 128, 128, 8
        $region16: #{tpu_custom_call.1} parent=11 // pred_fallthru
          _
        // Predicated region
        $region17: #{tpu_custom_call.1} parent=11 // pred_check
          %p184 = pneg %p88
        $region18: #{tpu_custom_call.1} parent=11 // pred_check_branch
          %186 = sbr.rel (%p184) target = $region20
        $region19: #{tpu_custom_call.1} parent=11 // pred_region
          _
        $region20: #{tpu_custom_call.1} parent=11 // pred_fallthru
          _
        // Predicated region
        $region21: #{tpu_custom_call.1} parent=11 // pred_check
          %p187 = pneg %p109
        $region22: #{tpu_custom_call.1} parent=11 // pred_check_branch
          %189 = sbr.rel (%p187) target = $region24
        $region23: #{tpu_custom_call.1} parent=11 // pred_region
          _
        $region24: #{tpu_custom_call.1} parent=11 // pred_fallthru
          _
        // Predicated region
        $region25: #{tpu_custom_call.1} parent=11 // pred_check
          %p190 = pneg %p130
        $region26: #{tpu_custom_call.1} parent=11 // pred_check_branch
          %192 = sbr.rel (%p190) target = $region28
        $region27: #{tpu_custom_call.1} parent=11 // pred_region
          _
        $region28: #{tpu_custom_call.1} parent=11 // pred_fallthru
          _
      $region12: #{tpu_custom_call.1} parent=5 // pred_fallthru
        _
      %p193 = scmp.lt.s32.totalorder %s20, 2
      // Predicated region
      $region29: #{tpu_custom_call.1} parent=5 // pred_check
        %p194 = pneg %p193
      $region30: #{tpu_custom_call.1} parent=5 // pred_check_branch
        %196 = sbr.rel (%p194) target = $region32
      $region31: #{tpu_custom_call.1} parent=5 // pred_region
        // Predicated region
        $region33: #{tpu_custom_call.1} parent=31 // pred_check
          %p197 = pneg %p40
        $region34: #{tpu_custom_call.1} parent=31 // pred_check_branch
          %199 = sbr.rel (%p197) target = $region36
        $region35: #{tpu_custom_call.1} parent=31 // pred_region
          %s200 = sand.u32 %s30, 1
          %s201 = scalar_lea.sflag [#allocation4], %s200
          %s202 = sand.u32 %s30, 1
          %s203 = smul.addr %s202, 8
          %s204 = scalar_lea.vmem [#allocation3], %s203
          %s206 = ssub.s32 128, 128
          %207 = vsyncadd %s201, %s206
          %s208 = smul.addr %s20, 128
          %s209 = scalar_lea.hbm %s0, %s208
          %s211 = sshll.u32 %s204, 4
          %s212 = int_to_ptr.vmem [resolvable:$true] %s211
          %214 = dma.hbm_to_vmem [thread:$0]  %s209, 128, %s212, %s201
        $region36: #{tpu_custom_call.1} parent=31 // pred_fallthru
          _
      $region32: #{tpu_custom_call.1} parent=5 // pred_fallthru
        _
      %p215 = scmp.le.s32.totalorder 1, %s20
      %p216 = scmp.lt.s32.totalorder %s20, 3
      %p217 = pnand %p215, %p216
      %p218 = pneg %p217
      // Predicated region
      $region37: #{tpu_custom_call.1} parent=5 // pred_check
        _
      $region38: #{tpu_custom_call.1} parent=5 // pred_check_branch
        %220 = sbr.rel (%p217) target = $region40
      $region39: #{tpu_custom_call.1} parent=5 // pred_region
        %s221 = ssub.s32 %s20, 1
        %s222 = sand.u32 %s33, 1
        %s223 = scalar_lea.sflag [#allocation4], %s222
        %s224 = sand.u32 %s33, 1
        %s225 = smul.addr %s224, 8
        %s226 = scalar_lea.vmem [#allocation3], %s225
        // Predicated region
        $region41: #{tpu_custom_call.1} parent=39 // pred_check
          %p227 = pneg %p46
        $region42: #{tpu_custom_call.1} parent=39 // pred_check_branch
          %229 = sbr.rel (%p227) target = $region44
        $region43: #{tpu_custom_call.1} parent=39 // pred_region
          %230 = dma.done %s223, 128
        $region44: #{tpu_custom_call.1} parent=39 // pred_fallthru
          _
        // Predicated region
        $region45: #{tpu_custom_call.1} parent=39 // pred_check
          %p231 = pneg %p67
        $region46: #{tpu_custom_call.1} parent=39 // pred_check_branch
          %233 = sbr.rel (%p231) target = $region48
        $region47: #{tpu_custom_call.1} parent=39 // pred_region
          %234 = dma.done [#allocation7], 512
        $region48: #{tpu_custom_call.1} parent=39 // pred_fallthru
          _
        %s235 = sand.u32 %s33, 1
        %s236 = scalar_lea.sflag [#allocation4], %s235
        %s237 = sand.u32 %s33, 1
        %s238 = smul.addr %s237, 8
        %s239 = scalar_lea.vmem [#allocation3], %s238
        %p240 = pneg %p46
        %p241 = pneg %p43
        %p242 = pneg %p67
        %p243 = pneg %p64
        %p244 = pneg %p88
        %p245 = pneg %p85
        %p246 = pneg %p109
        %p247 = pneg %p106
        %p248 = pneg %p130
        %p249 = pneg %p127
        %p250 = pneg %p156
        %p251 = pneg %p153
        %s252 = sand.u32 %s143, 1
        %s253 = scalar_lea.sflag [#allocation5], %s252
        %s254 = sand.u32 %s143, 1
        %s255 = scalar_lea.vmem [#allocation8], %s254
        %v256 = vld [vmem:[#allocation6] sm:$0xff]
        %v257 = vld [vmem:[#allocation6 + $0x8] sm:$0xff]
        %v258 = vld [vmem:[#allocation6 + $0x10] sm:$0xff]
        %v259 = vld [vmem:[#allocation6 + $0x18] sm:$0xff]
        %v260 = vld [vmem:[%s2] sm:$0x1]
        %v261 = vld [vmem:[%s3] sm:$0xff]
        %v262 = vld [vmem:[#allocation2] sm:$0x1]
        %v263 = vld [vmem:[%s226] sm:$0xff]
        %v265 = vlaneseq
        %v266 = vshrl.u32 %v265, 7
        %v267 = vsub.s32 0, %v266
        %v268 = vrot.slane %v260, %v267
        %vm270 = vcmask 261120
        %v272 = vsel %vm270, %v263, 0
        %274 = vmatprep.subr.mxu0 0.0
        %275 = vmatpush1.msra.mxu0 %v256
        %276 = vmatprep.subr.mxu0 0.0
        %277 = vmatpush1.msra.mxu0 %v257
        %278 = vmatprep.subr.mxu0 0.0
        %279 = vmatpush1.msra.mxu0 %v258
        %280 = vmatprep.subr.mxu0 0.0
        %281 = vmatpush1.msra.mxu0 %v259
        %282 = vmatprep.subr.mxu0 0.0
        %283 = vmatpush1.msra.mxu0 0.0
        %284 = vmatprep.subr.mxu0 0.0
        %285 = vmatpush1.msra.mxu0 0.0
        %286 = vmatprep.subr.mxu0 0.0
        %287 = vmatpush1.msra.mxu0 0.0
        %288 = vmatprep.subr.mxu0 0.0
        %289 = vmatpush1.msra.mxu0 0.0
        %290 = vmatprep.subr.mxu0 0.0
        %291 = vmatpush1.msra.mxu0 0.0
        %292 = vmatprep.subr.mxu0 0.0
        %293 = vmatpush1.msra.mxu0 0.0
        %294 = vmatprep.subr.mxu0 0.0
        %295 = vmatpush1.msra.mxu0 0.0
        %296 = vmatprep.subr.mxu0 0.0
        %297 = vmatpush1.msra.mxu0 0.0
        %298 = vmatprep.subr.mxu0 0.0
        %299 = vmatpush1.msra.mxu0 0.0
        %300 = vmatprep.subr.mxu0 0.0
        %301 = vmatpush1.msra.mxu0 0.0
        %302 = vmatprep.subr.mxu0 0.0
        %303 = vmatpush1.msra.mxu0 0.0
        %304 = vmatprep.subr.mxu0 0.0
        %305 = vmatpush1.msra.mxu0 0.0
        %306 = vmatprep.subr.mxu0 0.0
        %307 = vmatpush1.msra.mxu0 0.0
        %308 = vmatprep.subr.mxu0 0.0
        %309 = vmatpush1.msra.mxu0 0.0
        %310 = vmatprep.subr.mxu0 0.0
        %311 = vmatpush1.msra.mxu0 0.0
        %312 = vmatprep.subr.mxu0 0.0
        %313 = vmatpush1.msra.mxu0 0.0
        %314 = vmatprep.subr.mxu0 0.0
        %315 = vmatpush1.msra.mxu0 0.0
        %316 = vmatprep.subr.mxu0 0.0
        %317 = vmatpush1.msra.mxu0 0.0
        %318 = vmatprep.subr.mxu0 0.0
        %319 = vmatpush1.msra.mxu0 0.0
        %320 = vmatprep.subr.mxu0 0.0
        %321 = vmatpush1.msra.mxu0 0.0
        %322 = vmatprep.subr.mxu0 0.0
        %323 = vmatpush1.msra.mxu0 0.0
        %324 = vmatprep.subr.mxu0 0.0
        %325 = vmatpush1.msra.mxu0 0.0
        %326 = vmatprep.subr.mxu0 0.0
        %327 = vmatpush1.msra.mxu0 0.0
        %328 = vmatprep.subr.mxu0 0.0
        %329 = vmatpush1.msra.mxu0 0.0
        %330 = vmatprep.subr.mxu0 0.0
        %331 = vmatpush1.msra.mxu0 0.0
        %332 = vmatprep.subr.mxu0 0.0
        %333 = vmatpush1.msra.mxu0 0.0
        %334 = vmatprep.subr.mxu0 0.0
        %335 = vmatpush1.msra.mxu0 0.0
        %336 = vmatprep.subr.mxu0 0.0
        %337 = vmatpush1.msra.mxu0 0.0
        %338 = vmatprep.mubr.f32.mxu0 0.0
        %339 = vmatmul.mubr.f32.gmra.mrb[0].mxu0 %v272
        %v340 = vpop.f32.mrb[0].mxu0
        %v341 = vadd.f32 %v268, %v340
        %v342 = vpop.f32.mrb[0].mxu0
        %343 = vdwg.mxu0
        %v344 = vmax.f32 %v341, 0.0
        %v346 = vsel %vm270, %v261, 0
        %v349 = vsel %vm270, %v344, 0
        %351 = vmatprep.subr.mxu0 0.0
        %352 = vmatpush1.xpose.msra.mxu0 %v349
        %353 = vmatprep.subr.mxu0 0.0
        %354 = vmatpush1.xpose.msra.mxu0 0.0
        %355 = vmatprep.subr.mxu0 0.0
        %356 = vmatpush1.xpose.msra.mxu0 0.0
        %357 = vmatprep.subr.mxu0 0.0
        %358 = vmatpush1.xpose.msra.mxu0 0.0
        %359 = vmatprep.subr.mxu0 0.0
        %360 = vmatpush1.xpose.msra.mxu0 0.0
        %361 = vmatprep.subr.mxu0 0.0
        %362 = vmatpush1.xpose.msra.mxu0 0.0
        %363 = vmatprep.subr.mxu0 0.0
        %364 = vmatpush1.xpose.msra.mxu0 0.0
        %365 = vmatprep.subr.mxu0 0.0
        %366 = vmatpush1.xpose.msra.mxu0 0.0
        %367 = vmatprep.subr.mxu0 0.0
        %368 = vmatpush1.xpose.msra.mxu0 0.0
        %369 = vmatprep.subr.mxu0 0.0
        %370 = vmatpush1.xpose.msra.mxu0 0.0
        %371 = vmatprep.subr.mxu0 0.0
        %372 = vmatpush1.xpose.msra.mxu0 0.0
        %373 = vmatprep.subr.mxu0 0.0
        %374 = vmatpush1.xpose.msra.mxu0 0.0
        %375 = vmatprep.subr.mxu0 0.0
        %376 = vmatpush1.xpose.msra.mxu0 0.0
        %377 = vmatprep.subr.mxu0 0.0
        %378 = vmatpush1.xpose.msra.mxu0 0.0
        %379 = vmatprep.subr.mxu0 0.0
        %380 = vmatpush1.xpose.msra.mxu0 0.0
        %381 = vmatprep.subr.mxu0 0.0
        %382 = vmatpush1.xpose.msra.mxu0 0.0
        %383 = vmatprep.subr.mxu0 0.0
        %384 = vmatpush1.xpose.msra.mxu0 0.0
        %385 = vmatprep.subr.mxu0 0.0
        %386 = vmatpush1.xpose.msra.mxu0 0.0
        %387 = vmatprep.subr.mxu0 0.0
        %388 = vmatpush1.xpose.msra.mxu0 0.0
        %389 = vmatprep.subr.mxu0 0.0
        %390 = vmatpush1.xpose.msra.mxu0 0.0
        %391 = vmatprep.subr.mxu0 0.0
        %392 = vmatpush1.xpose.msra.mxu0 0.0
        %393 = vmatprep.subr.mxu0 0.0
        %394 = vmatpush1.xpose.msra.mxu0 0.0
        %395 = vmatprep.subr.mxu0 0.0
        %396 = vmatpush1.xpose.msra.mxu0 0.0
        %397 = vmatprep.subr.mxu0 0.0
        %398 = vmatpush1.xpose.msra.mxu0 0.0
        %399 = vmatprep.subr.mxu0 0.0
        %400 = vmatpush1.xpose.msra.mxu0 0.0
        %401 = vmatprep.subr.mxu0 0.0
        %402 = vmatpush1.xpose.msra.mxu0 0.0
        %403 = vmatprep.subr.mxu0 0.0
        %404 = vmatpush1.xpose.msra.mxu0 0.0
        %405 = vmatprep.subr.mxu0 0.0
        %406 = vmatpush1.xpose.msra.mxu0 0.0
        %407 = vmatprep.subr.mxu0 0.0
        %408 = vmatpush1.xpose.msra.mxu0 0.0
        %409 = vmatprep.subr.mxu0 0.0
        %410 = vmatpush1.xpose.msra.mxu0 0.0
        %411 = vmatprep.subr.mxu0 0.0
        %412 = vmatpush1.xpose.msra.mxu0 0.0
        %413 = vmatprep.subr.mxu0 0.0
        %414 = vmatpush1.xpose.msra.mxu0 0.0
        %415 = vmatprep.mubr.f32.mxu0 0.0
        %416 = vmatmul.mubr.f32.gmra.mrb[0].mxu0 %v346
        %v417 = vpop.f32.mrb[0].mxu0
        %v418 = vadd.f32 0.0, %v417
        %v419 = vpop.f32.mrb[0].mxu0
        %420 = vdwg.mxu0
        %422 = vset.pattern.permute.xlu0 0
        %423 = vperm.xlu0 %422, %v262
        %v424 = vpop.permute.xlu0 %423
        %v426 = vlaneseq
        %v427 = vshrl.u32 %v426, 7
        %v428 = vsub.s32 0, %v427
        %v429 = vrot.slane %v424, %v428
        %v430 = vadd.f32 %v418, %v429
        %vm431 = vcmask 57344
        %432 = vst.msk [vmem:[%s255] sm:$0x1] %vm431, %v430
        %s433 = sand.u32 %s143, 1
        %s434 = scalar_lea.sflag [#allocation5], %s433
        %s435 = sand.u32 %s143, 1
        %s436 = scalar_lea.vmem [#allocation8], %s435
        // Predicated region
        $region49: #{tpu_custom_call.1} parent=39 // pred_check
          %p437 = pneg %p153
        $region50: #{tpu_custom_call.1} parent=39 // pred_check_branch
          %439 = sbr.rel (%p437) target = $region52
        $region51: #{tpu_custom_call.1} parent=39 // pred_region
          %s441 = ssub.s32 16, 16
          %442 = vsyncadd %s434, %s441
          %s443 = smul.addr %s25, 16
          %s444 = scalar_lea.hbm %s5, %s443
          %s446 = sshll.u32 %s436, 4
          %s447 = int_to_ptr.vmem [resolvable:$true] %s446
          %449 = dma.vmem_to_hbm [thread:$0]  %s447, 16, %s444, %s434
        $region52: #{tpu_custom_call.1} parent=39 // pred_fallthru
          _
      $region40: #{tpu_custom_call.1} parent=5 // pred_fallthru
        _
      %p450 = scmp.le.s32.totalorder 2, %s20
      // Predicated region
      $region53: #{tpu_custom_call.1} parent=5 // pred_check
        %p451 = pneg %p450
      $region54: #{tpu_custom_call.1} parent=5 // pred_check_branch
        %453 = sbr.rel (%p451) target = $region56
      $region55: #{tpu_custom_call.1} parent=5 // pred_region
        %s454 = ssub.s32 %s20, 2
        // Predicated region
        $region57: #{tpu_custom_call.1} parent=55 // pred_check
          %p455 = pneg %p159
        $region58: #{tpu_custom_call.1} parent=55 // pred_check_branch
          %457 = sbr.rel (%p455) target = $region60
        $region59: #{tpu_custom_call.1} parent=55 // pred_region
          %s458 = sand.u32 %s144, 1
          %s459 = scalar_lea.sflag [#allocation5], %s458
          %s460 = sand.u32 %s144, 1
          %s461 = scalar_lea.vmem [#allocation8], %s460
          %462 = dma.done %s459, 16
        $region60: #{tpu_custom_call.1} parent=55 // pred_fallthru
          _
      $region56: #{tpu_custom_call.1} parent=5 // pred_fallthru
        _
    $region6: #{tpu_custom_call.1} parent=1 // loop_footer
      %s24 = sadd.s32 1, %s20
    $region7: #{tpu_custom_call.1} parent=1 // loop_footer_branch
      %19 = sbr.rel target = $region3
    $region8: #{tpu_custom_call.1} parent=1 // loop_exit
      _
    %463 = vsyncpa [#allocation4], 1
    %s464 = scalar_lea.sflag [#allocation4], 1
    %465 = vsyncpa %s464, 1
    %466 = vsyncpa [#allocation7], 1
    %467 = vsyncpa [#allocation5], 1
    %s468 = scalar_lea.sflag [#allocation5], 1
    %469 = vsyncpa %s468, 1

</llo_original>
